<compile_context>
chip_gen: v6e
topology: v6e:2x2x1
jax: 0.10.0
libtpu: 0.0.40
codegen_flags: <defaults>
</compile_context>

<pallas_src>
import functools
import math

import jax
import jax.numpy as jnp
import numpy as np
from jax.experimental import pallas as pl
from jax.experimental.pallas import tpu as pltpu


# ---------------------------------------------------------------------------
# Kernels
# ---------------------------------------------------------------------------
def _emb_avgtok_kernel(ids_ref, lut_ref, o_ref, *, token, groups_per_block,
                       e_pad, unroll):
    """token_len > 1 path.

    For each group of `token` consecutive ids (table already has the pad row
    zeroed and the sqrt(E) scale folded in):
        opc = lut[id_0]
        avg = mean_{j=1..token-1} lut[id_j]
    The output row is [opc | avg], written as two 128-aligned lane slices.

    ids_ref : SMEM scalar-prefetch ref, (N,) int32
    lut_ref : VMEM-resident (vocab, e_pad) f32 table (pre-scaled, pad row = 0)
    o_ref   : (groups_per_block, 2*e_pad) f32 output tile
    """
    tile = pl.program_id(0)
    base = tile * (groups_per_block * token)
    inv = 1.0 / (token - 1)

    def chunk(c, carry):
        g0 = c * unroll
        for u in range(unroll):                       # small static unroll
            g = g0 + u
            gb = base + g * token
            first = lut_ref[pl.ds(ids_ref[gb], 1), :]           # (1, e_pad)
            acc = lut_ref[pl.ds(ids_ref[gb + 1], 1), :]         # j = 1 init
            for j in range(2, token):                           # token small
                acc = acc + lut_ref[pl.ds(ids_ref[gb + j], 1), :]
            # 128-lane-aligned slice stores (no last-axis concatenate copy)
            o_ref[pl.ds(g, 1), 0:e_pad] = first
            o_ref[pl.ds(g, 1), e_pad:2 * e_pad] = acc * inv
        return carry

    jax.lax.fori_loop(0, groups_per_block // unroll, chunk, 0)


def _emb_plain_kernel(ids_ref, lut_ref, o_ref, *, rows_per_block, unroll):
    """token_len == 1 path: plain (pre-scaled, UNMASKED) embedding lookup."""
    tile = pl.program_id(0)
    base = tile * rows_per_block

    def chunk(c, carry):
        r0 = c * unroll
        for u in range(unroll):                       # small static unroll
            r = r0 + u
            o_ref[pl.ds(r, 1), :] = lut_ref[pl.ds(ids_ref[base + r], 1), :]
        return carry

    jax.lax.fori_loop(0, rows_per_block // unroll, chunk, 0)


# ---------------------------------------------------------------------------
# Helpers
# ---------------------------------------------------------------------------
def _round_up(x, m):
    return ((x + m - 1) // m) * m


def _pick_block(n, cap=512):
    """Largest multiple-of-8 divisor of n up to `cap`, preferring grid >= 2
    steps (megacore); fall back to the full axis (block == dim is legal)."""
    best = None
    for d in range(min(cap, n), 7, -1):
        if d % 8 == 0 and n % d == 0:
            if n // d >= 2:
                return d
            if best is None:
                best = d
    return best if best is not None else n


def _vmem_limit_bytes(table_bytes, out_tile_bytes):
    # Table (possibly double-buffered by the pipeline) + double-buffered
    # output tile + slack, capped so the value is valid on every generation.
    need = 2 * table_bytes + 2 * out_tile_bytes + (4 << 20)
    return int(min(max(need, 8 << 20), 64 << 20))


# ---------------------------------------------------------------------------
# Module wrapper
# ---------------------------------------------------------------------------
class Embeddings:
    """JAX/Pallas port of the PyTorch Embeddings module.

    Note: the original module constructs nn.Embedding(vocab, e) WITHOUT
    padding_idx, so `pad_idx` is stored but (intentionally) unused here too.
    """

    def __init__(self, d_model, vocab, token_len=1, token=0, ins_pad=0,
                 pad_idx=0, key=None, groups_per_block=None, rows_per_block=None):
        self.d_model = d_model
        self.vocab = vocab
        self.token_len = token_len
        self.token = token
        self.ins_pad = ins_pad
        self.pad_idx = pad_idx
        self.groups_per_block = groups_per_block
        self.rows_per_block = rows_per_block

        e = d_model // token_len
        self.e = e
        self.e_pad = _round_up(e, 128)          # lane-dense last dim

        key = jax.random.PRNGKey(0) if key is None else key
        # nn.Embedding default init: weight ~ N(0, 1)
        self.lut = jax.random.normal(key, (vocab, e), dtype=jnp.float32)

        # Pre-scale by sqrt(E); for the avg_batch path also fold the pad mask
        # into the table by zeroing row `ins_pad` (ONLY valid for that path —
        # the plain path must keep the unmasked table).
        table = self.lut * math.sqrt(e)
        if token_len > 1:
            table = table.at[ins_pad].set(0.0)
        if self.e_pad > e:
            table = jnp.pad(table, ((0, 0), (0, self.e_pad - e)))
        self._table = table                     # (vocab, e_pad) f32

    def __call__(self, x):
        B, L = x.shape
        e, e_pad = self.e, self.e_pad
        N = B * L
        # Clamp ids so a bad id can never become a silent OOB VMEM read.
        ids = jnp.clip(x.reshape(N).astype(jnp.int32), 0, self.vocab - 1)
        table_bytes = int(self._table.size) * 4

        if self.token_len > 1:
            assert self.token >= 2, "token must be >= 2 when token_len > 1"
            assert L % self.token == 0, "L must be divisible by token"
            BG = N // self.token                    # total number of groups
            gpb = self.groups_per_block or _pick_block(BG)
            assert BG % gpb == 0, "groups_per_block must divide B*L//token"
            assert gpb % 8 == 0 or gpb == BG, \
                "groups_per_block must be a multiple of 8 (or the full axis)"
            unroll = math.gcd(gpb, 8)
            grid = (BG // gpb,)

            kernel = functools.partial(
                _emb_avgtok_kernel, token=self.token,
                groups_per_block=gpb, e_pad=e_pad, unroll=unroll)

            limit = _vmem_limit_bytes(table_bytes, gpb * 2 * e_pad * 4)
            out = pl.pallas_call(
                kernel,
                out_shape=jax.ShapeDtypeStruct((BG, 2 * e_pad), jnp.float32),
                grid_spec=pltpu.PrefetchScalarGridSpec(
                    num_scalar_prefetch=1,
                    grid=grid,
                    # lut: constant index_map -> DMA'd once, VMEM-resident
                    in_specs=[pl.BlockSpec((self.vocab, e_pad),
                                           lambda t, ids_s: (0, 0))],
                    out_specs=pl.BlockSpec((gpb, 2 * e_pad),
                                           lambda t, ids_s: (t, 0)),
                ),
                compiler_params=pltpu.CompilerParams(
                    dimension_semantics=("parallel",),
                    vmem_limit_bytes=limit),
            )(ids, self._table)

            if e_pad == e:
                res = out                                   # already [opc|avg]
            else:
                res = jnp.concatenate(
                    [out[:, :e], out[:, e_pad:e_pad + e]], axis=-1)
            return res.reshape(B, L // self.token, 2 * e)

        else:
            rpb = self.rows_per_block or _pick_block(N)
            assert N % rpb == 0, "rows_per_block must divide B * L"
            assert rpb % 8 == 0 or rpb == N, \
                "rows_per_block must be a multiple of 8 (or the full axis)"
            unroll = math.gcd(rpb, 8)
            grid = (N // rpb,)

            kernel = functools.partial(_emb_plain_kernel,
                                       rows_per_block=rpb, unroll=unroll)

            limit = _vmem_limit_bytes(table_bytes, rpb * e_pad * 4)
            out = pl.pallas_call(
                kernel,
                out_shape=jax.ShapeDtypeStruct((N, e_pad), jnp.float32),
                grid_spec=pltpu.PrefetchScalarGridSpec(
                    num_scalar_prefetch=1,
                    grid=grid,
                    in_specs=[pl.BlockSpec((self.vocab, e_pad),
                                           lambda t, ids_s: (0, 0))],
                    out_specs=pl.BlockSpec((rpb, e_pad),
                                           lambda t, ids_s: (t, 0)),
                ),
                compiler_params=pltpu.CompilerParams(
                    dimension_semantics=("parallel",),
                    vmem_limit_bytes=limit),
            )(ids, self._table)
            return out[:, :e].reshape(B, L, e)


# ---------------------------------------------------------------------------
# Pure-JAX reference (matches the PyTorch forward semantics)
# ---------------------------------------------------------------------------
def _reference_forward(lut, x, d_model, token_len, token, ins_pad):
    e = d_model // token_len
    emb = lut[x] * math.sqrt(e)                      # (B, L, E)
    if token_len > 1:
        mask = (x != ins_pad)[..., None].astype(emb.dtype)
        tmp = emb * mask
        B, L, E = tmp.shape
        tmp = tmp.reshape(B, L // token, token, E)
        opc = tmp[:, :, 0, :]
        avg = tmp[:, :, 1:, :].mean(axis=2)
        return jnp.concatenate([opc, avg], axis=-1)  # (B, L//token, 2E)
    return emb


# ---------------------------------------------------------------------------
# Demo / self-test
# ---------------------------------------------------------------------------
if __name__ == "__main__":
    key = jax.random.PRNGKey(0)
    k_lut, k_x, k_lut2, k_x2 = jax.random.split(key, 4)

    # ---- avg_batch path: d_model=32, token_len=2 -> E=16, token=4, vocab=50 ----
    d_model, vocab, token_len, token, ins_pad = 32, 50, 2, 4, 0
    # B=4, L=16 -> 16 groups; auto tile pick -> groups_per_block=8, grid=(2,)
    mod = Embeddings(d_model, vocab, token_len=token_len, token=token,
                     ins_pad=ins_pad, key=k_lut)
    x = jax.random.randint(k_x, (4, 16), 0, vocab, dtype=jnp.int32)
    # force a few pad tokens so the (folded-in) mask path is exercised
    x = x.at[0, 2].set(ins_pad).at[1, 5].set(ins_pad).at[3, 12].set(ins_pad)

    out = jax.block_until_ready(mod(x))
    ref = _reference_forward(mod.lut, x, d_model, token_len, token, ins_pad)
    np.testing.assert_allclose(np.asarray(out), np.asarray(ref),
                               rtol=1e-5, atol=1e-4)
    assert out.shape == (4, 16 // token, 2 * (d_model // token_len))

    # ---- plain path: token_len=1 -> E=32 (unmasked table) ----
    mod2 = Embeddings(d_model, vocab, token_len=1, token=0, ins_pad=ins_pad,
                      key=k_lut2)
    x2 = jax.random.randint(k_x2, (2, 8), 0, vocab, dtype=jnp.int32)
    out2 = jax.block_until_ready(mod2(x2))
    ref2 = _reference_forward(mod2.lut, x2, d_model, 1, 0, ins_pad)
    np.testing.assert_allclose(np.asarray(out2), np.asarray(ref2),
                               rtol=1e-5, atol=1e-4)
    assert out2.shape == (2, 8, d_model)

    print("KERNEL_OK")
</pallas_src>

<mosaic_0001>
module attributes {stable_mosaic.version = 11 : i64} {
  func.func @_emb_avgtok_kernel(%arg0: i32, %arg1: memref<64xi32, #tpu.memory_space<smem>>, %arg2: memref<50x128xf32, #tpu.memory_space<vmem>>, %arg3: memref<8x256xf32, #tpu.memory_space<vmem>>) attributes {dimension_semantics = [#tpu.dimension_semantics<parallel>], iteration_bounds = array<i64: 2>, scalar_prefetch = 1 : i64, scratch_operands = 0 : i64, tpu.core_type = #tpu.core_type<tc>, window_params = [{pipeline_mode = #tpu.pipeline_mode<synchronous>, transform_indices = @transform_0, window_bounds = array<i64: 50, 128>}, {transform_indices = @transform_1, window_bounds = array<i64: 8, 256>}]} {
    %c32_i32 = arith.constant 32 : i32
    %0 = arith.muli %arg0, %c32_i32 : i32
    %c0_i32 = arith.constant 0 : i32
    %c8_i32 = arith.constant 8 : i32
    %1 = arith.muli %c0_i32, %c8_i32 : i32
    %c0_i32_0 = arith.constant 0 : i32
    %2 = arith.addi %1, %c0_i32_0 : i32
    %c4_i32 = arith.constant 4 : i32
    %3 = arith.muli %2, %c4_i32 : i32
    %4 = arith.addi %0, %3 : i32
    %5 = arith.index_cast %4 : i32 to index
    %6 = memref.load %arg1[%5] : memref<64xi32, #tpu.memory_space<smem>>
    %7 = arith.index_cast %6 : i32 to index
    %c0 = arith.constant 0 : index
    %8 = vector.load %arg2[%7, %c0] : memref<50x128xf32, #tpu.memory_space<vmem>>, vector<1x128xf32>
    %c1_i32 = arith.constant 1 : i32
    %9 = arith.addi %4, %c1_i32 : i32
    %10 = arith.index_cast %9 : i32 to index
    %11 = memref.load %arg1[%10] : memref<64xi32, #tpu.memory_space<smem>>
    %12 = arith.index_cast %11 : i32 to index
    %c0_1 = arith.constant 0 : index
    %13 = vector.load %arg2[%12, %c0_1] : memref<50x128xf32, #tpu.memory_space<vmem>>, vector<1x128xf32>
    %c2_i32 = arith.constant 2 : i32
    %14 = arith.addi %4, %c2_i32 : i32
    %15 = arith.index_cast %14 : i32 to index
    %16 = memref.load %arg1[%15] : memref<64xi32, #tpu.memory_space<smem>>
    %17 = arith.index_cast %16 : i32 to index
    %c0_2 = arith.constant 0 : index
    %18 = vector.load %arg2[%17, %c0_2] : memref<50x128xf32, #tpu.memory_space<vmem>>, vector<1x128xf32>
    %19 = arith.addf %13, %18 : vector<1x128xf32>
    %c3_i32 = arith.constant 3 : i32
    %20 = arith.addi %4, %c3_i32 : i32
    %21 = arith.index_cast %20 : i32 to index
    %22 = memref.load %arg1[%21] : memref<64xi32, #tpu.memory_space<smem>>
    %23 = arith.index_cast %22 : i32 to index
    %c0_3 = arith.constant 0 : index
    %24 = vector.load %arg2[%23, %c0_3] : memref<50x128xf32, #tpu.memory_space<vmem>>, vector<1x128xf32>
    %25 = arith.addf %19, %24 : vector<1x128xf32>
    %26 = arith.index_cast %2 : i32 to index
    %c0_4 = arith.constant 0 : index
    %27 = vector.load %arg3[%26, %c0_4] : memref<8x256xf32, #tpu.memory_space<vmem>>, vector<1x128xf32>
    tpu.vector_store %arg3[%26, %c0_4], %8 {strides = array<i32>} : memref<8x256xf32, #tpu.memory_space<vmem>>, vector<1x128xf32>,
    %cst = arith.constant 0.333333343 : f32
    %28 = vector.broadcast %cst : f32 to vector<1x128xf32>
    %29 = arith.mulf %25, %28 : vector<1x128xf32>
    %30 = arith.index_cast %2 : i32 to index
    %c128 = arith.constant 128 : index
    %31 = vector.load %arg3[%30, %c128] : memref<8x256xf32, #tpu.memory_space<vmem>>, vector<1x128xf32>
    tpu.vector_store %arg3[%30, %c128], %29 {strides = array<i32>} : memref<8x256xf32, #tpu.memory_space<vmem>>, vector<1x128xf32>,
    %c1_i32_5 = arith.constant 1 : i32
    %32 = arith.addi %1, %c1_i32_5 : i32
    %c4_i32_6 = arith.constant 4 : i32
    %33 = arith.muli %32, %c4_i32_6 : i32
    %34 = arith.addi %0, %33 : i32
    %35 = arith.index_cast %34 : i32 to index
    %36 = memref.load %arg1[%35] : memref<64xi32, #tpu.memory_space<smem>>
    %37 = arith.index_cast %36 : i32 to index
    %c0_7 = arith.constant 0 : index
    %38 = vector.load %arg2[%37, %c0_7] : memref<50x128xf32, #tpu.memory_space<vmem>>, vector<1x128xf32>
    %c1_i32_8 = arith.constant 1 : i32
    %39 = arith.addi %34, %c1_i32_8 : i32
    %40 = arith.index_cast %39 : i32 to index
    %41 = memref.load %arg1[%40] : memref<64xi32, #tpu.memory_space<smem>>
    %42 = arith.index_cast %41 : i32 to index
    %c0_9 = arith.constant 0 : index
    %43 = vector.load %arg2[%42, %c0_9] : memref<50x128xf32, #tpu.memory_space<vmem>>, vector<1x128xf32>
    %c2_i32_10 = arith.constant 2 : i32
    %44 = arith.addi %34, %c2_i32_10 : i32
    %45 = arith.index_cast %44 : i32 to index
    %46 = memref.load %arg1[%45] : memref<64xi32, #tpu.memory_space<smem>>
    %47 = arith.index_cast %46 : i32 to index
    %c0_11 = arith.constant 0 : index
    %48 = vector.load %arg2[%47, %c0_11] : memref<50x128xf32, #tpu.memory_space<vmem>>, vector<1x128xf32>
    %49 = arith.addf %43, %48 : vector<1x128xf32>
    %c3_i32_12 = arith.constant 3 : i32
    %50 = arith.addi %34, %c3_i32_12 : i32
    %51 = arith.index_cast %50 : i32 to index
    %52 = memref.load %arg1[%51] : memref<64xi32, #tpu.memory_space<smem>>
    %53 = arith.index_cast %52 : i32 to index
    %c0_13 = arith.constant 0 : index
    %54 = vector.load %arg2[%53, %c0_13] : memref<50x128xf32, #tpu.memory_space<vmem>>, vector<1x128xf32>
    %55 = arith.addf %49, %54 : vector<1x128xf32>
    %56 = arith.index_cast %32 : i32 to index
    %c0_14 = arith.constant 0 : index
    %57 = vector.load %arg3[%56, %c0_14] : memref<8x256xf32, #tpu.memory_space<vmem>>, vector<1x128xf32>
    tpu.vector_store %arg3[%56, %c0_14], %38 {strides = array<i32>} : memref<8x256xf32, #tpu.memory_space<vmem>>, vector<1x128xf32>,
    %cst_15 = arith.constant 0.333333343 : f32
    %58 = vector.broadcast %cst_15 : f32 to vector<1x128xf32>
    %59 = arith.mulf %55, %58 : vector<1x128xf32>
    %60 = arith.index_cast %32 : i32 to index
    %c128_16 = arith.constant 128 : index
    %61 = vector.load %arg3[%60, %c128_16] : memref<8x256xf32, #tpu.memory_space<vmem>>, vector<1x128xf32>
    tpu.vector_store %arg3[%60, %c128_16], %59 {strides = array<i32>} : memref<8x256xf32, #tpu.memory_space<vmem>>, vector<1x128xf32>,
    %c2_i32_17 = arith.constant 2 : i32
    %62 = arith.addi %1, %c2_i32_17 : i32
    %c4_i32_18 = arith.constant 4 : i32
    %63 = arith.muli %62, %c4_i32_18 : i32
    %64 = arith.addi %0, %63 : i32
    %65 = arith.index_cast %64 : i32 to index
    %66 = memref.load %arg1[%65] : memref<64xi32, #tpu.memory_space<smem>>
    %67 = arith.index_cast %66 : i32 to index
    %c0_19 = arith.constant 0 : index
    %68 = vector.load %arg2[%67, %c0_19] : memref<50x128xf32, #tpu.memory_space<vmem>>, vector<1x128xf32>
    %c1_i32_20 = arith.constant 1 : i32
    %69 = arith.addi %64, %c1_i32_20 : i32
    %70 = arith.index_cast %69 : i32 to index
    %71 = memref.load %arg1[%70] : memref<64xi32, #tpu.memory_space<smem>>
    %72 = arith.index_cast %71 : i32 to index
    %c0_21 = arith.constant 0 : index
    %73 = vector.load %arg2[%72, %c0_21] : memref<50x128xf32, #tpu.memory_space<vmem>>, vector<1x128xf32>
    %c2_i32_22 = arith.constant 2 : i32
    %74 = arith.addi %64, %c2_i32_22 : i32
    %75 = arith.index_cast %74 : i32 to index
    %76 = memref.load %arg1[%75] : memref<64xi32, #tpu.memory_space<smem>>
    %77 = arith.index_cast %76 : i32 to index
    %c0_23 = arith.constant 0 : index
    %78 = vector.load %arg2[%77, %c0_23] : memref<50x128xf32, #tpu.memory_space<vmem>>, vector<1x128xf32>
    %79 = arith.addf %73, %78 : vector<1x128xf32>
    %c3_i32_24 = arith.constant 3 : i32
    %80 = arith.addi %64, %c3_i32_24 : i32
    %81 = arith.index_cast %80 : i32 to index
    %82 = memref.load %arg1[%81] : memref<64xi32, #tpu.memory_space<smem>>
    %83 = arith.index_cast %82 : i32 to index
    %c0_25 = arith.constant 0 : index
    %84 = vector.load %arg2[%83, %c0_25] : memref<50x128xf32, #tpu.memory_space<vmem>>, vector<1x128xf32>
    %85 = arith.addf %79, %84 : vector<1x128xf32>
    %86 = arith.index_cast %62 : i32 to index
    %c0_26 = arith.constant 0 : index
    %87 = vector.load %arg3[%86, %c0_26] : memref<8x256xf32, #tpu.memory_space<vmem>>, vector<1x128xf32>
    tpu.vector_store %arg3[%86, %c0_26], %68 {strides = array<i32>} : memref<8x256xf32, #tpu.memory_space<vmem>>, vector<1x128xf32>,
    %cst_27 = arith.constant 0.333333343 : f32
    %88 = vector.broadcast %cst_27 : f32 to vector<1x128xf32>
    %89 = arith.mulf %85, %88 : vector<1x128xf32>
    %90 = arith.index_cast %62 : i32 to index
    %c128_28 = arith.constant 128 : index
    %91 = vector.load %arg3[%90, %c128_28] : memref<8x256xf32, #tpu.memory_space<vmem>>, vector<1x128xf32>
    tpu.vector_store %arg3[%90, %c128_28], %89 {strides = array<i32>} : memref<8x256xf32, #tpu.memory_space<vmem>>, vector<1x128xf32>,
    %c3_i32_29 = arith.constant 3 : i32
    %92 = arith.addi %1, %c3_i32_29 : i32
    %c4_i32_30 = arith.constant 4 : i32
    %93 = arith.muli %92, %c4_i32_30 : i32
    %94 = arith.addi %0, %93 : i32
    %95 = arith.index_cast %94 : i32 to index
    %96 = memref.load %arg1[%95] : memref<64xi32, #tpu.memory_space<smem>>
    %97 = arith.index_cast %96 : i32 to index
    %c0_31 = arith.constant 0 : index
    %98 = vector.load %arg2[%97, %c0_31] : memref<50x128xf32, #tpu.memory_space<vmem>>, vector<1x128xf32>
    %c1_i32_32 = arith.constant 1 : i32
    %99 = arith.addi %94, %c1_i32_32 : i32
    %100 = arith.index_cast %99 : i32 to index
    %101 = memref.load %arg1[%100] : memref<64xi32, #tpu.memory_space<smem>>
    %102 = arith.index_cast %101 : i32 to index
    %c0_33 = arith.constant 0 : index
    %103 = vector.load %arg2[%102, %c0_33] : memref<50x128xf32, #tpu.memory_space<vmem>>, vector<1x128xf32>
    %c2_i32_34 = arith.constant 2 : i32
    %104 = arith.addi %94, %c2_i32_34 : i32
    %105 = arith.index_cast %104 : i32 to index
    %106 = memref.load %arg1[%105] : memref<64xi32, #tpu.memory_space<smem>>
    %107 = arith.index_cast %106 : i32 to index
    %c0_35 = arith.constant 0 : index
    %108 = vector.load %arg2[%107, %c0_35] : memref<50x128xf32, #tpu.memory_space<vmem>>, vector<1x128xf32>
    %109 = arith.addf %103, %108 : vector<1x128xf32>
    %c3_i32_36 = arith.constant 3 : i32
    %110 = arith.addi %94, %c3_i32_36 : i32
    %111 = arith.index_cast %110 : i32 to index
    %112 = memref.load %arg1[%111] : memref<64xi32, #tpu.memory_space<smem>>
    %113 = arith.index_cast %112 : i32 to index
    %c0_37 = arith.constant 0 : index
    %114 = vector.load %arg2[%113, %c0_37] : memref<50x128xf32, #tpu.memory_space<vmem>>, vector<1x128xf32>
    %115 = arith.addf %109, %114 : vector<1x128xf32>
    %116 = arith.index_cast %92 : i32 to index
    %c0_38 = arith.constant 0 : index
    %117 = vector.load %arg3[%116, %c0_38] : memref<8x256xf32, #tpu.memory_space<vmem>>, vector<1x128xf32>
    tpu.vector_store %arg3[%116, %c0_38], %98 {strides = array<i32>} : memref<8x256xf32, #tpu.memory_space<vmem>>, vector<1x128xf32>,
    %cst_39 = arith.constant 0.333333343 : f32
    %118 = vector.broadcast %cst_39 : f32 to vector<1x128xf32>
    %119 = arith.mulf %115, %118 : vector<1x128xf32>
    %120 = arith.index_cast %92 : i32 to index
    %c128_40 = arith.constant 128 : index
    %121 = vector.load %arg3[%120, %c128_40] : memref<8x256xf32, #tpu.memory_space<vmem>>, vector<1x128xf32>
    tpu.vector_store %arg3[%120, %c128_40], %119 {strides = array<i32>} : memref<8x256xf32, #tpu.memory_space<vmem>>, vector<1x128xf32>,
    %c4_i32_41 = arith.constant 4 : i32
    %122 = arith.addi %1, %c4_i32_41 : i32
    %c4_i32_42 = arith.constant 4 : i32
    %123 = arith.muli %122, %c4_i32_42 : i32
    %124 = arith.addi %0, %123 : i32
    %125 = arith.index_cast %124 : i32 to index
    %126 = memref.load %arg1[%125] : memref<64xi32, #tpu.memory_space<smem>>
    %127 = arith.index_cast %126 : i32 to index
    %c0_43 = arith.constant 0 : index
    %128 = vector.load %arg2[%127, %c0_43] : memref<50x128xf32, #tpu.memory_space<vmem>>, vector<1x128xf32>
    %c1_i32_44 = arith.constant 1 : i32
    %129 = arith.addi %124, %c1_i32_44 : i32
    %130 = arith.index_cast %129 : i32 to index
    %131 = memref.load %arg1[%130] : memref<64xi32, #tpu.memory_space<smem>>
    %132 = arith.index_cast %131 : i32 to index
    %c0_45 = arith.constant 0 : index
    %133 = vector.load %arg2[%132, %c0_45] : memref<50x128xf32, #tpu.memory_space<vmem>>, vector<1x128xf32>
    %c2_i32_46 = arith.constant 2 : i32
    %134 = arith.addi %124, %c2_i32_46 : i32
    %135 = arith.index_cast %134 : i32 to index
    %136 = memref.load %arg1[%135] : memref<64xi32, #tpu.memory_space<smem>>
    %137 = arith.index_cast %136 : i32 to index
    %c0_47 = arith.constant 0 : index
    %138 = vector.load %arg2[%137, %c0_47] : memref<50x128xf32, #tpu.memory_space<vmem>>, vector<1x128xf32>
    %139 = arith.addf %133, %138 : vector<1x128xf32>
    %c3_i32_48 = arith.constant 3 : i32
    %140 = arith.addi %124, %c3_i32_48 : i32
    %141 = arith.index_cast %140 : i32 to index
    %142 = memref.load %arg1[%141] : memref<64xi32, #tpu.memory_space<smem>>
    %143 = arith.index_cast %142 : i32 to index
    %c0_49 = arith.constant 0 : index
    %144 = vector.load %arg2[%143, %c0_49] : memref<50x128xf32, #tpu.memory_space<vmem>>, vector<1x128xf32>
    %145 = arith.addf %139, %144 : vector<1x128xf32>
    %146 = arith.index_cast %122 : i32 to index
    %c0_50 = arith.constant 0 : index
    %147 = vector.load %arg3[%146, %c0_50] : memref<8x256xf32, #tpu.memory_space<vmem>>, vector<1x128xf32>
    tpu.vector_store %arg3[%146, %c0_50], %128 {strides = array<i32>} : memref<8x256xf32, #tpu.memory_space<vmem>>, vector<1x128xf32>,
    %cst_51 = arith.constant 0.333333343 : f32
    %148 = vector.broadcast %cst_51 : f32 to vector<1x128xf32>
    %149 = arith.mulf %145, %148 : vector<1x128xf32>
    %150 = arith.index_cast %122 : i32 to index
    %c128_52 = arith.constant 128 : index
    %151 = vector.load %arg3[%150, %c128_52] : memref<8x256xf32, #tpu.memory_space<vmem>>, vector<1x128xf32>
    tpu.vector_store %arg3[%150, %c128_52], %149 {strides = array<i32>} : memref<8x256xf32, #tpu.memory_space<vmem>>, vector<1x128xf32>,
    %c5_i32 = arith.constant 5 : i32
    %152 = arith.addi %1, %c5_i32 : i32
    %c4_i32_53 = arith.constant 4 : i32
    %153 = arith.muli %152, %c4_i32_53 : i32
    %154 = arith.addi %0, %153 : i32
    %155 = arith.index_cast %154 : i32 to index
    %156 = memref.load %arg1[%155] : memref<64xi32, #tpu.memory_space<smem>>
    %157 = arith.index_cast %156 : i32 to index
    %c0_54 = arith.constant 0 : index
    %158 = vector.load %arg2[%157, %c0_54] : memref<50x128xf32, #tpu.memory_space<vmem>>, vector<1x128xf32>
    %c1_i32_55 = arith.constant 1 : i32
    %159 = arith.addi %154, %c1_i32_55 : i32
    %160 = arith.index_cast %159 : i32 to index
    %161 = memref.load %arg1[%160] : memref<64xi32, #tpu.memory_space<smem>>
    %162 = arith.index_cast %161 : i32 to index
    %c0_56 = arith.constant 0 : index
    %163 = vector.load %arg2[%162, %c0_56] : memref<50x128xf32, #tpu.memory_space<vmem>>, vector<1x128xf32>
    %c2_i32_57 = arith.constant 2 : i32
    %164 = arith.addi %154, %c2_i32_57 : i32
    %165 = arith.index_cast %164 : i32 to index
    %166 = memref.load %arg1[%165] : memref<64xi32, #tpu.memory_space<smem>>
    %167 = arith.index_cast %166 : i32 to index
    %c0_58 = arith.constant 0 : index
    %168 = vector.load %arg2[%167, %c0_58] : memref<50x128xf32, #tpu.memory_space<vmem>>, vector<1x128xf32>
    %169 = arith.addf %163, %168 : vector<1x128xf32>
    %c3_i32_59 = arith.constant 3 : i32
    %170 = arith.addi %154, %c3_i32_59 : i32
    %171 = arith.index_cast %170 : i32 to index
    %172 = memref.load %arg1[%171] : memref<64xi32, #tpu.memory_space<smem>>
    %173 = arith.index_cast %172 : i32 to index
    %c0_60 = arith.constant 0 : index
    %174 = vector.load %arg2[%173, %c0_60] : memref<50x128xf32, #tpu.memory_space<vmem>>, vector<1x128xf32>
    %175 = arith.addf %169, %174 : vector<1x128xf32>
    %176 = arith.index_cast %152 : i32 to index
    %c0_61 = arith.constant 0 : index
    %177 = vector.load %arg3[%176, %c0_61] : memref<8x256xf32, #tpu.memory_space<vmem>>, vector<1x128xf32>
    tpu.vector_store %arg3[%176, %c0_61], %158 {strides = array<i32>} : memref<8x256xf32, #tpu.memory_space<vmem>>, vector<1x128xf32>,
    %cst_62 = arith.constant 0.333333343 : f32
    %178 = vector.broadcast %cst_62 : f32 to vector<1x128xf32>
    %179 = arith.mulf %175, %178 : vector<1x128xf32>
    %180 = arith.index_cast %152 : i32 to index
    %c128_63 = arith.constant 128 : index
    %181 = vector.load %arg3[%180, %c128_63] : memref<8x256xf32, #tpu.memory_space<vmem>>, vector<1x128xf32>
    tpu.vector_store %arg3[%180, %c128_63], %179 {strides = array<i32>} : memref<8x256xf32, #tpu.memory_space<vmem>>, vector<1x128xf32>,
    %c6_i32 = arith.constant 6 : i32
    %182 = arith.addi %1, %c6_i32 : i32
    %c4_i32_64 = arith.constant 4 : i32
    %183 = arith.muli %182, %c4_i32_64 : i32
    %184 = arith.addi %0, %183 : i32
    %185 = arith.index_cast %184 : i32 to index
    %186 = memref.load %arg1[%185] : memref<64xi32, #tpu.memory_space<smem>>
    %187 = arith.index_cast %186 : i32 to index
    %c0_65 = arith.constant 0 : index
    %188 = vector.load %arg2[%187, %c0_65] : memref<50x128xf32, #tpu.memory_space<vmem>>, vector<1x128xf32>
    %c1_i32_66 = arith.constant 1 : i32
    %189 = arith.addi %184, %c1_i32_66 : i32
    %190 = arith.index_cast %189 : i32 to index
    %191 = memref.load %arg1[%190] : memref<64xi32, #tpu.memory_space<smem>>
    %192 = arith.index_cast %191 : i32 to index
    %c0_67 = arith.constant 0 : index
    %193 = vector.load %arg2[%192, %c0_67] : memref<50x128xf32, #tpu.memory_space<vmem>>, vector<1x128xf32>
    %c2_i32_68 = arith.constant 2 : i32
    %194 = arith.addi %184, %c2_i32_68 : i32
    %195 = arith.index_cast %194 : i32 to index
    %196 = memref.load %arg1[%195] : memref<64xi32, #tpu.memory_space<smem>>
    %197 = arith.index_cast %196 : i32 to index
    %c0_69 = arith.constant 0 : index
    %198 = vector.load %arg2[%197, %c0_69] : memref<50x128xf32, #tpu.memory_space<vmem>>, vector<1x128xf32>
    %199 = arith.addf %193, %198 : vector<1x128xf32>
    %c3_i32_70 = arith.constant 3 : i32
    %200 = arith.addi %184, %c3_i32_70 : i32
    %201 = arith.index_cast %200 : i32 to index
    %202 = memref.load %arg1[%201] : memref<64xi32, #tpu.memory_space<smem>>
    %203 = arith.index_cast %202 : i32 to index
    %c0_71 = arith.constant 0 : index
    %204 = vector.load %arg2[%203, %c0_71] : memref<50x128xf32, #tpu.memory_space<vmem>>, vector<1x128xf32>
    %205 = arith.addf %199, %204 : vector<1x128xf32>
    %206 = arith.index_cast %182 : i32 to index
    %c0_72 = arith.constant 0 : index
    %207 = vector.load %arg3[%206, %c0_72] : memref<8x256xf32, #tpu.memory_space<vmem>>, vector<1x128xf32>
    tpu.vector_store %arg3[%206, %c0_72], %188 {strides = array<i32>} : memref<8x256xf32, #tpu.memory_space<vmem>>, vector<1x128xf32>,
    %cst_73 = arith.constant 0.333333343 : f32
    %208 = vector.broadcast %cst_73 : f32 to vector<1x128xf32>
    %209 = arith.mulf %205, %208 : vector<1x128xf32>
    %210 = arith.index_cast %182 : i32 to index
    %c128_74 = arith.constant 128 : index
    %211 = vector.load %arg3[%210, %c128_74] : memref<8x256xf32, #tpu.memory_space<vmem>>, vector<1x128xf32>
    tpu.vector_store %arg3[%210, %c128_74], %209 {strides = array<i32>} : memref<8x256xf32, #tpu.memory_space<vmem>>, vector<1x128xf32>,
    %c7_i32 = arith.constant 7 : i32
    %212 = arith.addi %1, %c7_i32 : i32
    %c4_i32_75 = arith.constant 4 : i32
    %213 = arith.muli %212, %c4_i32_75 : i32
    %214 = arith.addi %0, %213 : i32
    %215 = arith.index_cast %214 : i32 to index
    %216 = memref.load %arg1[%215] : memref<64xi32, #tpu.memory_space<smem>>
    %217 = arith.index_cast %216 : i32 to index
    %c0_76 = arith.constant 0 : index
    %218 = vector.load %arg2[%217, %c0_76] : memref<50x128xf32, #tpu.memory_space<vmem>>, vector<1x128xf32>
    %c1_i32_77 = arith.constant 1 : i32
    %219 = arith.addi %214, %c1_i32_77 : i32
    %220 = arith.index_cast %219 : i32 to index
    %221 = memref.load %arg1[%220] : memref<64xi32, #tpu.memory_space<smem>>
    %222 = arith.index_cast %221 : i32 to index
    %c0_78 = arith.constant 0 : index
    %223 = vector.load %arg2[%222, %c0_78] : memref<50x128xf32, #tpu.memory_space<vmem>>, vector<1x128xf32>
    %c2_i32_79 = arith.constant 2 : i32
    %224 = arith.addi %214, %c2_i32_79 : i32
    %225 = arith.index_cast %224 : i32 to index
    %226 = memref.load %arg1[%225] : memref<64xi32, #tpu.memory_space<smem>>
    %227 = arith.index_cast %226 : i32 to index
    %c0_80 = arith.constant 0 : index
    %228 = vector.load %arg2[%227, %c0_80] : memref<50x128xf32, #tpu.memory_space<vmem>>, vector<1x128xf32>
    %229 = arith.addf %223, %228 : vector<1x128xf32>
    %c3_i32_81 = arith.constant 3 : i32
    %230 = arith.addi %214, %c3_i32_81 : i32
    %231 = arith.index_cast %230 : i32 to index
    %232 = memref.load %arg1[%231] : memref<64xi32, #tpu.memory_space<smem>>
    %233 = arith.index_cast %232 : i32 to index
    %c0_82 = arith.constant 0 : index
    %234 = vector.load %arg2[%233, %c0_82] : memref<50x128xf32, #tpu.memory_space<vmem>>, vector<1x128xf32>
    %235 = arith.addf %229, %234 : vector<1x128xf32>
    %236 = arith.index_cast %212 : i32 to index
    %c0_83 = arith.constant 0 : index
    %237 = vector.load %arg3[%236, %c0_83] : memref<8x256xf32, #tpu.memory_space<vmem>>, vector<1x128xf32>
    tpu.vector_store %arg3[%236, %c0_83], %218 {strides = array<i32>} : memref<8x256xf32, #tpu.memory_space<vmem>>, vector<1x128xf32>,
    %cst_84 = arith.constant 0.333333343 : f32
    %238 = vector.broadcast %cst_84 : f32 to vector<1x128xf32>
    %239 = arith.mulf %235, %238 : vector<1x128xf32>
    %240 = arith.index_cast %212 : i32 to index
    %c128_85 = arith.constant 128 : index
    %241 = vector.load %arg3[%240, %c128_85] : memref<8x256xf32, #tpu.memory_space<vmem>>, vector<1x128xf32>
    tpu.vector_store %arg3[%240, %c128_85], %239 {strides = array<i32>} : memref<8x256xf32, #tpu.memory_space<vmem>>, vector<1x128xf32>,
    %c1_i32_86 = arith.constant 1 : i32
    return
  }
  func.func @transform_0(%arg0: i32, %arg1: memref<64xi32, #tpu.memory_space<smem>>) -> (i32, i32) {
    %c0_i32 = arith.constant 0 : i32
    %c0_i32_0 = arith.constant 0 : i32
    %c0_i32_1 = arith.constant 0 : i32
    return %c0_i32, %c0_i32_0 : i32, i32
  }
  func.func @transform_1(%arg0: i32, %arg1: memref<64xi32, #tpu.memory_space<smem>>) -> (i32, i32) {
    %c0_i32 = arith.constant 0 : i32
    %c0_i32_0 = arith.constant 0 : i32
    return %arg0, %c0_i32 : i32, i32
  }
}

</mosaic_0001>

<llo_original>
// kernel: tpu_custom_call.1
$region0: #{tpu_custom_call.1}
  #allocation0 [shape = 'u32[]', space=smem, size = 0x4, offset = 0x4, fixed_abs, tag = 'smem constant byte address 0x4 - core index']
  #allocation1 [shape = 'u32[144,128]{1,0:T(1,128)}', space=vmem, size = 0x12000, scoped, tag = 'internal scratch']
  #allocation2 [shape = 's32[1]{0}', space=sflag, size = 0x4, scoped, tag = 'scoped memory for tpu_custom_call.1']
  #allocation3 [shape = 'u8[512]{0}', space=smem, size = 0x200, scoped, tag = 'prefetched SMEM operand 0']
  %s0 = inlined_call_operand.hbm [shape: s32[64], index: 0, kind: input, shape index: {}]
  %s1 = inlined_call_operand.hbm [shape: f32[50,128], index: 1, kind: input, shape index: {}]
  %s2 = inlined_call_operand.hbm [shape: f32[16,256], index: 2, kind: output, shape index: {}]
  %s3 = sld [smem:[#allocation0]]
  $region41: #{tpu_custom_call.1} parent=0
    _
  %s5 = ssub.s32 1, %s3
  %s6 = scalar_select 0, %s5, %s3
  %8 = dma.hbm_to_smem %s0, 16, [#allocation3], [#allocation2]
  %9 = dma.done [#allocation2], 16
  %10 = sfence
  $region1: #{tpu_custom_call.1} parent=0
    #allocation4 [shape = 'u8[28672]{0}', space=vmem, size = 0x7000, scoped, tag = 'input window, operand 1, single buffered']
    #allocation5 [shape = 's32[2]{0}', space=sflag, size = 0x8, scoped, tag = 'scoped memory for tpu_custom_call.1']
    #allocation6 [shape = 's32[2]{0}', space=sflag, size = 0x8, scoped, tag = 'scoped memory for tpu_custom_call.1']
    #allocation7 [shape = 'u8[16384]{0}', space=vmem, size = 0x4000, scoped, tag = 'output window, operand 0']
    %11 = vsyncpa [#allocation5], 0
    %12 = vsyncpa [#allocation6], 0
    %s13 = scalar_lea.sflag [#allocation6], 1
    %14 = vsyncpa %s13, 0
    loop: start=0, step=1, limit=4
    $region2: #{tpu_custom_call.1} parent=1 // loop_pre_header
      _
    $region3: #{tpu_custom_call.1} parent=1 // loop_header
      %s16 = sphi 0, %s20
      %p17 = scmp.ge.s32.totalorder %s16, 4
      %s24 = sphi 0, %s24
      %s26 = sphi 0, %s24
      %s27 = sphi 0, %s26
      %s41 = sphi 0, %s27
      %s47 = sphi 0, %s49
      %s50 = sphi 0, %s47
      %s51 = sphi 0, %s50
      %s67 = sphi 0, %s51
    $region4: #{tpu_custom_call.1} parent=1 // loop_header_branch
      %19 = sbr.rel (%p17) target = $region8
    $region5: #{tpu_custom_call.1} parent=1 // loop_body
      %s21 = ssub.s32 %s16, 1
      %s22 = ssub.s32 %s16, 2
      %s23 = sadd.s32 %s16, 1
      %s25 = sadd.s32 %s24, 1
      %p28 = scmp.eq.s32.totalorder %s16, 1
      %p29 = scmp.ne.s32.totalorder %s24, %s26
      %p30 = scmp.eq.s32.totalorder %s16, 0
      %p31 = por %p29, %p30
      %p32 = scmp.ne.s32.totalorder %s24, %s26
      %p33 = scmp.eq.s32.totalorder %s21, 1
      %p34 = por %p32, %p33
      %p35 = scmp.ne.s32.totalorder %s26, %s27
      %p36 = scmp.eq.s32.totalorder %s21, 0
      %p37 = por %p35, %p36
      %p38 = scmp.ne.s32.totalorder %s26, %s27
      %p39 = scmp.eq.s32.totalorder %s22, 1
      %p40 = por %p38, %p39
      %p42 = scmp.ne.s32.totalorder %s27, %s41
      %p43 = scmp.eq.s32.totalorder %s22, 0
      %p44 = por %p42, %p43
      %s45 = ssub.s32 %s16, %s23
      %p46 = scmp.eq.s32.totalorder %s45, 0
      %s48 = sadd.s32 %s47, 1
      %s49 = scalar_select %p46, %s47, %s48
      %p52 = pneg %p46
      %p53 = scmp.eq.s32.totalorder %s16, 1
      %p54 = por %p52, %p53
      %p55 = scmp.ne.s32.totalorder %s47, %s50
      %p56 = scmp.eq.s32.totalorder %s16, 0
      %p57 = por %p55, %p56
      %p58 = scmp.ne.s32.totalorder %s47, %s50
      %p59 = scmp.eq.s32.totalorder %s21, 1
      %p60 = por %p58, %p59
      %p61 = scmp.ne.s32.totalorder %s50, %s51
      %p62 = scmp.eq.s32.totalorder %s21, 0
      %p63 = por %p61, %p62
      %p64 = scmp.ne.s32.totalorder %s50, %s51
      %p65 = scmp.eq.s32.totalorder %s22, 1
      %p66 = por %p64, %p65
      %p68 = scmp.ne.s32.totalorder %s51, %s67
      %p69 = scmp.eq.s32.totalorder %s22, 0
      %p70 = por %p68, %p69
      %p71 = scmp.le.s32.totalorder 1, %s16
      %p72 = scmp.lt.s32.totalorder %s16, 3
      %p73 = pnand %p71, %p72
      %p74 = pneg %p73
      // Predicated region
      $region9: #{tpu_custom_call.1} parent=5 // pred_check
        _
      $region10: #{tpu_custom_call.1} parent=5 // pred_check_branch
        %76 = sbr.rel (%p73) target = $region12
      $region11: #{tpu_custom_call.1} parent=5 // pred_region
        %s77 = ssub.s32 %s16, 1
        // Predicated region
        $region13: #{tpu_custom_call.1} parent=11 // pred_check
          %p78 = pneg %p37
        $region14: #{tpu_custom_call.1} parent=11 // pred_check_branch
          %80 = sbr.rel (%p78) target = $region16
        $region15: #{tpu_custom_call.1} parent=11 // pred_region
          %s82 = ssub.s32 896, 896
          %83 = vsyncadd [#allocation5], %s82
          %s84 = sshll.u32 [#allocation4], 4
          %s85 = int_to_ptr.vmem [resolvable:$true] %s84
          %90 = dma.hbm_to_vmem [thread:$0]  %s1, 896, %s85, [#allocation5], 128, 128, 8
        $region16: #{tpu_custom_call.1} parent=11 // pred_fallthru
          _
      $region12: #{tpu_custom_call.1} parent=5 // pred_fallthru
        _
      %p91 = scmp.lt.s32.totalorder %s16, 2
      // Predicated region
      $region17: #{tpu_custom_call.1} parent=5 // pred_check
        %p92 = pneg %p91
      $region18: #{tpu_custom_call.1} parent=5 // pred_check_branch
        %94 = sbr.rel (%p92) target = $region20
      $region19: #{tpu_custom_call.1} parent=5 // pred_region
        _
      $region20: #{tpu_custom_call.1} parent=5 // pred_fallthru
        _
      %p95 = scmp.le.s32.totalorder 1, %s16
      %p96 = scmp.lt.s32.totalorder %s16, 3
      %p97 = pnand %p95, %p96
      %p98 = pneg %p97
      // Predicated region
      $region21: #{tpu_custom_call.1} parent=5 // pred_check
        _
      $region22: #{tpu_custom_call.1} parent=5 // pred_check_branch
        %100 = sbr.rel (%p97) target = $region24
      $region23: #{tpu_custom_call.1} parent=5 // pred_region
        %s101 = ssub.s32 %s16, 1
        // Predicated region
        $region25: #{tpu_custom_call.1} parent=23 // pred_check
          %p102 = pneg %p37
        $region26: #{tpu_custom_call.1} parent=23 // pred_check_branch
          %104 = sbr.rel (%p102) target = $region28
        $region27: #{tpu_custom_call.1} parent=23 // pred_region
          %105 = dma.done [#allocation5], 896
        $region28: #{tpu_custom_call.1} parent=23 // pred_fallthru
          _
        %p106 = pneg %p37
        %p107 = pneg %p34
        %p108 = pneg %p63
        %p109 = pneg %p60
        %s110 = sand.u32 %s50, 1
        %s111 = scalar_lea.sflag [#allocation6], %s110
        %s112 = sand.u32 %s50, 1
        %s113 = smul.addr %s112, 16
        %s114 = scalar_lea.vmem [#allocation7], %s113
        %s115 = smul.u32 %s21, 32
        %s116 = sld [smem:[#allocation3 + %s115]]
        %s117 = scalar_lea.vmem [#allocation4], %s116
        %v118 = vld [vmem:[%s117] sm:$0x1]
        %s119 = sadd.s32 %s115, 1
        %s120 = sld [smem:[#allocation3 + %s119]]
        %s121 = scalar_lea.vmem [#allocation4], %s120
        %v122 = vld [vmem:[%s121] sm:$0x1]
        %s123 = sadd.s32 %s115, 2
        %s124 = sld [smem:[#allocation3 + %s123]]
        %s125 = scalar_lea.vmem [#allocation4], %s124
        %v126 = vld [vmem:[%s125] sm:$0x1]
        %v127 = vadd.f32 %v122, %v126
        %s128 = sadd.s32 %s115, 3
        %s129 = sld [smem:[#allocation3 + %s128]]
        %s130 = scalar_lea.vmem [#allocation4], %s129
        %v131 = vld [vmem:[%s130] sm:$0x1]
        %v132 = vadd.f32 %v127, %v131
        %133 = vst [vmem:[%s114] sm:$0x1] %v118
        %v134 = vmul.f32 %v132, 0.33333334
        %135 = vst [vmem:[%s114 + $0x8] sm:$0x1] %v134
        %s136 = sadd.s32 %s115, 4
        %s137 = sld [smem:[#allocation3 + %s136]]
        %s138 = scalar_lea.vmem [#allocation4], %s137
        %v139 = vld [vmem:[%s138] sm:$0x1]
        %s140 = sadd.s32 %s115, 5
        %s141 = sld [smem:[#allocation3 + %s140]]
        %s142 = scalar_lea.vmem [#allocation4], %s141
        %v143 = vld [vmem:[%s142] sm:$0x1]
        %s144 = sadd.s32 %s115, 6
        %s145 = sld [smem:[#allocation3 + %s144]]
        %s146 = scalar_lea.vmem [#allocation4], %s145
        %v147 = vld [vmem:[%s146] sm:$0x1]
        %v148 = vadd.f32 %v143, %v147
        %s149 = sadd.s32 %s115, 7
        %s150 = sld [smem:[#allocation3 + %s149]]
        %s151 = scalar_lea.vmem [#allocation4], %s150
        %v152 = vld [vmem:[%s151] sm:$0x1]
        %v153 = vadd.f32 %v148, %v152
        %154 = vst [vmem:[%s114 + $0x1] sm:$0x1] %v139
        %v155 = vmul.f32 %v153, 0.33333334
        %156 = vst [vmem:[%s114 + $0x9] sm:$0x1] %v155
        %s157 = sadd.s32 %s115, 8
        %s158 = sld [smem:[#allocation3 + %s157]]
        %s159 = scalar_lea.vmem [#allocation4], %s158
        %v160 = vld [vmem:[%s159] sm:$0x1]
        %s161 = sadd.s32 %s115, 9
        %s162 = sld [smem:[#allocation3 + %s161]]
        %s163 = scalar_lea.vmem [#allocation4], %s162
        %v164 = vld [vmem:[%s163] sm:$0x1]
        %s165 = sadd.s32 %s115, 10
        %s166 = sld [smem:[#allocation3 + %s165]]
        %s167 = scalar_lea.vmem [#allocation4], %s166
        %v168 = vld [vmem:[%s167] sm:$0x1]
        %v169 = vadd.f32 %v164, %v168
        %s170 = sadd.s32 %s115, 11
        %s171 = sld [smem:[#allocation3 + %s170]]
        %s172 = scalar_lea.vmem [#allocation4], %s171
        %v173 = vld [vmem:[%s172] sm:$0x1]
        %v174 = vadd.f32 %v169, %v173
        %175 = vst [vmem:[%s114 + $0x2] sm:$0x1] %v160
        %v176 = vmul.f32 %v174, 0.33333334
        %177 = vst [vmem:[%s114 + $0xa] sm:$0x1] %v176
        %s178 = sadd.s32 %s115, 12
        %s179 = sld [smem:[#allocation3 + %s178]]
        %s180 = scalar_lea.vmem [#allocation4], %s179
        %v181 = vld [vmem:[%s180] sm:$0x1]
        %s182 = sadd.s32 %s115, 13
        %s183 = sld [smem:[#allocation3 + %s182]]
        %s184 = scalar_lea.vmem [#allocation4], %s183
        %v185 = vld [vmem:[%s184] sm:$0x1]
        %s186 = sadd.s32 %s115, 14
        %s187 = sld [smem:[#allocation3 + %s186]]
        %s188 = scalar_lea.vmem [#allocation4], %s187
        %v189 = vld [vmem:[%s188] sm:$0x1]
        %v190 = vadd.f32 %v185, %v189
        %s191 = sadd.s32 %s115, 15
        %s192 = sld [smem:[#allocation3 + %s191]]
        %s193 = scalar_lea.vmem [#allocation4], %s192
        %v194 = vld [vmem:[%s193] sm:$0x1]
        %v195 = vadd.f32 %v190, %v194
        %196 = vst [vmem:[%s114 + $0x3] sm:$0x1] %v181
        %v197 = vmul.f32 %v195, 0.33333334
        %198 = vst [vmem:[%s114 + $0xb] sm:$0x1] %v197
        %s199 = sadd.s32 %s115, 16
        %s200 = sld [smem:[#allocation3 + %s199]]
        %s201 = scalar_lea.vmem [#allocation4], %s200
        %v202 = vld [vmem:[%s201] sm:$0x1]
        %s203 = sadd.s32 %s115, 17
        %s204 = sld [smem:[#allocation3 + %s203]]
        %s205 = scalar_lea.vmem [#allocation4], %s204
        %v206 = vld [vmem:[%s205] sm:$0x1]
        %s207 = sadd.s32 %s115, 18
        %s208 = sld [smem:[#allocation3 + %s207]]
        %s209 = scalar_lea.vmem [#allocation4], %s208
        %v210 = vld [vmem:[%s209] sm:$0x1]
        %v211 = vadd.f32 %v206, %v210
        %s212 = sadd.s32 %s115, 19
        %s213 = sld [smem:[#allocation3 + %s212]]
        %s214 = scalar_lea.vmem [#allocation4], %s213
        %v215 = vld [vmem:[%s214] sm:$0x1]
        %v216 = vadd.f32 %v211, %v215
        %217 = vst [vmem:[%s114 + $0x4] sm:$0x1] %v202
        %v218 = vmul.f32 %v216, 0.33333334
        %219 = vst [vmem:[%s114 + $0xc] sm:$0x1] %v218
        %s220 = sadd.s32 %s115, 20
        %s221 = sld [smem:[#allocation3 + %s220]]
        %s222 = scalar_lea.vmem [#allocation4], %s221
        %v223 = vld [vmem:[%s222] sm:$0x1]
        %s224 = sadd.s32 %s115, 21
        %s225 = sld [smem:[#allocation3 + %s224]]
        %s226 = scalar_lea.vmem [#allocation4], %s225
        %v227 = vld [vmem:[%s226] sm:$0x1]
        %s228 = sadd.s32 %s115, 22
        %s229 = sld [smem:[#allocation3 + %s228]]
        %s230 = scalar_lea.vmem [#allocation4], %s229
        %v231 = vld [vmem:[%s230] sm:$0x1]
        %v232 = vadd.f32 %v227, %v231
        %s233 = sadd.s32 %s115, 23
        %s234 = sld [smem:[#allocation3 + %s233]]
        %s235 = scalar_lea.vmem [#allocation4], %s234
        %v236 = vld [vmem:[%s235] sm:$0x1]
        %v237 = vadd.f32 %v232, %v236
        %238 = vst [vmem:[%s114 + $0x5] sm:$0x1] %v223
        %v239 = vmul.f32 %v237, 0.33333334
        %240 = vst [vmem:[%s114 + $0xd] sm:$0x1] %v239
        %s241 = sadd.s32 %s115, 24
        %s242 = sld [smem:[#allocation3 + %s241]]
        %s243 = scalar_lea.vmem [#allocation4], %s242
        %v244 = vld [vmem:[%s243] sm:$0x1]
        %s245 = sadd.s32 %s115, 25
        %s246 = sld [smem:[#allocation3 + %s245]]
        %s247 = scalar_lea.vmem [#allocation4], %s246
        %v248 = vld [vmem:[%s247] sm:$0x1]
        %s249 = sadd.s32 %s115, 26
        %s250 = sld [smem:[#allocation3 + %s249]]
        %s251 = scalar_lea.vmem [#allocation4], %s250
        %v252 = vld [vmem:[%s251] sm:$0x1]
        %v253 = vadd.f32 %v248, %v252
        %s254 = sadd.s32 %s115, 27
        %s255 = sld [smem:[#allocation3 + %s254]]
        %s256 = scalar_lea.vmem [#allocation4], %s255
        %v257 = vld [vmem:[%s256] sm:$0x1]
        %v258 = vadd.f32 %v253, %v257
        %259 = vst [vmem:[%s114 + $0x6] sm:$0x1] %v244
        %v260 = vmul.f32 %v258, 0.33333334
        %261 = vst [vmem:[%s114 + $0xe] sm:$0x1] %v260
        %s262 = sadd.s32 %s115, 28
        %s263 = sld [smem:[#allocation3 + %s262]]
        %s264 = scalar_lea.vmem [#allocation4], %s263
        %v265 = vld [vmem:[%s264] sm:$0x1]
        %s266 = sadd.s32 %s115, 29
        %s267 = sld [smem:[#allocation3 + %s266]]
        %s268 = scalar_lea.vmem [#allocation4], %s267
        %v269 = vld [vmem:[%s268] sm:$0x1]
        %s270 = sadd.s32 %s115, 30
        %s271 = sld [smem:[#allocation3 + %s270]]
        %s272 = scalar_lea.vmem [#allocation4], %s271
        %v273 = vld [vmem:[%s272] sm:$0x1]
        %v274 = vadd.f32 %v269, %v273
        %s275 = sadd.s32 %s115, 31
        %s276 = sld [smem:[#allocation3 + %s275]]
        %s277 = scalar_lea.vmem [#allocation4], %s276
        %v278 = vld [vmem:[%s277] sm:$0x1]
        %v279 = vadd.f32 %v274, %v278
        %280 = vst [vmem:[%s114 + $0x7] sm:$0x1] %v265
        %v281 = vmul.f32 %v279, 0.33333334
        %282 = vst [vmem:[%s114 + $0xf] sm:$0x1] %v281
        %s283 = sand.u32 %s50, 1
        %s284 = scalar_lea.sflag [#allocation6], %s283
        %s285 = sand.u32 %s50, 1
        %s286 = smul.addr %s285, 16
        %s287 = scalar_lea.vmem [#allocation7], %s286
        // Predicated region
        $region29: #{tpu_custom_call.1} parent=23 // pred_check
          %p288 = pneg %p60
        $region30: #{tpu_custom_call.1} parent=23 // pred_check_branch
          %290 = sbr.rel (%p288) target = $region32
        $region31: #{tpu_custom_call.1} parent=23 // pred_region
          %s292 = ssub.s32 256, 256
          %293 = vsyncadd %s284, %s292
          %s294 = smul.addr %s21, 2
          %s295 = smul.addr %s294, 128
          %s296 = scalar_lea.hbm %s2, %s295
          %s298 = sshll.u32 %s287, 4
          %s299 = int_to_ptr.vmem [resolvable:$true] %s298
          %301 = dma.vmem_to_hbm [thread:$0]  %s299, 256, %s296, %s284
        $region32: #{tpu_custom_call.1} parent=23 // pred_fallthru
          _
      $region24: #{tpu_custom_call.1} parent=5 // pred_fallthru
        _
      %p302 = scmp.le.s32.totalorder 2, %s16
      // Predicated region
      $region33: #{tpu_custom_call.1} parent=5 // pred_check
        %p303 = pneg %p302
      $region34: #{tpu_custom_call.1} parent=5 // pred_check_branch
        %305 = sbr.rel (%p303) target = $region36
      $region35: #{tpu_custom_call.1} parent=5 // pred_region
        %s306 = ssub.s32 %s16, 2
        // Predicated region
        $region37: #{tpu_custom_call.1} parent=35 // pred_check
          %p307 = pneg %p66
        $region38: #{tpu_custom_call.1} parent=35 // pred_check_branch
          %309 = sbr.rel (%p307) target = $region40
        $region39: #{tpu_custom_call.1} parent=35 // pred_region
          %s310 = sand.u32 %s51, 1
          %s311 = scalar_lea.sflag [#allocation6], %s310
          %s312 = sand.u32 %s51, 1
          %s313 = smul.addr %s312, 16
          %s314 = scalar_lea.vmem [#allocation7], %s313
          %315 = dma.done %s311, 256
        $region40: #{tpu_custom_call.1} parent=35 // pred_fallthru
          _
      $region36: #{tpu_custom_call.1} parent=5 // pred_fallthru
        _
    $region6: #{tpu_custom_call.1} parent=1 // loop_footer
      %s20 = sadd.s32 1, %s16
    $region7: #{tpu_custom_call.1} parent=1 // loop_footer_branch
      %15 = sbr.rel target = $region3
    $region8: #{tpu_custom_call.1} parent=1 // loop_exit
      _
    %316 = vsyncpa [#allocation5], 1
    %s317 = scalar_lea.sflag [#allocation5], 1
    %318 = vsyncpa %s317, 1
    %319 = vsyncpa [#allocation6], 1
    %s320 = scalar_lea.sflag [#allocation6], 1
    %321 = vsyncpa %s320, 1

</llo_original>
